<compile_context>
chip_gen: v5e
topology: v5e:2x2
jax: 0.10.0
libtpu: 0.0.40
codegen_flags: <defaults>
</compile_context>

<pallas_src>
import jax
import jax.numpy as jnp
from jax import lax
from jax.experimental import pallas as pl
from jax.experimental.pallas import tpu as pltpu


def _linear_classifier_kernel(a_ref, w_ref, b_ref, o_ref):
    # a_ref: (1, tm, C)   activations (tokens x channels)
    # w_ref: (L, C)       conv weight (resident)
    # b_ref: (L, 1)       bias, f32 (resident)
    # o_ref: (1, L, tm)   output tile, token axis on lanes (lane-dense store)
    acc = lax.dot_general(
        w_ref[...], a_ref[0],
        dimension_numbers=(((1,), (1,)), ((), ())),   # contract over C
        preferred_element_type=jnp.float32,
    )                                                 # (L, tm)
    o_ref[0] = (acc + b_ref[...]).astype(o_ref.dtype)


def _choose_tm(hw, n, c, itemsize, *, vmem_budget=24 << 20, max_tm=4096):
    """Pick the token tile: as large as the VMEM budget allows, multiple of 128."""
    # A's double buffer (2 * tm * C * itemsize) dominates VMEM use.
    cap = vmem_budget // max(1, 2 * c * itemsize)
    tm = max(128, min(max_tm, (cap // 128) * 128))
    hw_pad = ((hw + 127) // 128) * 128
    tm = min(tm, hw_pad)
    # Keep at least 2 total grid steps so both v7x TensorCores get work.
    while n * pl.cdiv(hw, tm) < 2 and tm > 128:
        tm = max(128, ((tm // 2) // 128) * 128)
    return tm


def linear_classifier_forward(embeddings, weight, bias, *, tokenH, tokenW,
                              compute_dtype=None, tm=None):
    """
    embeddings: (N, tokenH*tokenW, C)  (anything reshapeable to (-1, H, W, C))
    weight:     (L, C)   -- Conv2d(C, L, 1x1) weight squeezed to 2-D
    bias:       (L,)
    returns:    (N, L, tokenH, tokenW) -- NCHW, matching the PyTorch module
    """
    L, C = weight.shape
    HW = tokenH * tokenW

    # reshape(-1, H, W, C) semantics, flattened over (H, W): (N, HW, C).
    x = embeddings.reshape(-1, HW, C)
    N = x.shape[0]
    M = N * HW

    out_dtype = embeddings.dtype
    if compute_dtype is not None:
        x = x.astype(compute_dtype)
        weight = weight.astype(compute_dtype)
    in_itemsize = jnp.dtype(x.dtype).itemsize
    out_itemsize = jnp.dtype(out_dtype).itemsize

    if tm is None:
        tm = _choose_tm(HW, N, C, in_itemsize)
    n_hw = pl.cdiv(HW, tm)

    b2 = bias.astype(jnp.float32).reshape(L, 1)

    # VMEM limit: double-buffered A + double-buffered output + resident W/bias,
    # with 2x headroom; well under the 64 MiB physical VMEM of v7x.
    need = (2 * tm * C * in_itemsize
            + 2 * tm * L * out_itemsize
            + L * C * in_itemsize
            + L * 128 * 4)
    vmem_limit = int(min(max(2 * need, 16 << 20), 56 << 20))

    out3 = pl.pallas_call(
        _linear_classifier_kernel,
        out_shape=jax.ShapeDtypeStruct((N, L, HW), out_dtype),
        grid_spec=pltpu.PrefetchScalarGridSpec(
            num_scalar_prefetch=0,
            grid=(N, n_hw),
            in_specs=[
                pl.BlockSpec((1, tm, C), lambda n, j: (n, j, 0)),
                pl.BlockSpec((L, C), lambda n, j: (0, 0)),
                pl.BlockSpec((L, 1), lambda n, j: (0, 0)),
            ],
            out_specs=pl.BlockSpec((1, L, tm), lambda n, j: (n, 0, j)),
        ),
        compiler_params=pltpu.CompilerParams(
            dimension_semantics=("parallel", "parallel"),
            vmem_limit_bytes=vmem_limit,
        ),
        cost_estimate=pl.CostEstimate(
            flops=2 * M * C * L,
            bytes_accessed=(M * C * in_itemsize
                            + L * C * in_itemsize
                            + M * L * out_itemsize),
            transcendentals=0,
        ),
    )(x, weight, b2)

    # (N, L, H*W) -> (N, L, H, W): pure reshape, no transpose, no extra HBM pass.
    return out3.reshape(N, L, tokenH, tokenW)


def _reference_forward(embeddings, weight, bias, tokenH, tokenW):
    C = weight.shape[1]
    x = embeddings.reshape(-1, tokenH, tokenW, C).astype(jnp.float32)
    out = jnp.einsum("nhwc,lc->nlhw", x, weight.astype(jnp.float32))
    out = out + bias.astype(jnp.float32)[None, :, None, None]
    return out.astype(embeddings.dtype)


if __name__ == "__main__":
    # Small, DINOv2-flavored shapes.
    batch = 2
    in_channels = 32
    tokenH = 16
    tokenW = 16
    num_labels = 1

    key = jax.random.PRNGKey(0)
    k_emb, k_w, k_b = jax.random.split(key, 3)

    # Input: patch-token embeddings (N, num_tokens, C)
    embeddings = jax.random.normal(
        k_emb, (batch, tokenH * tokenW, in_channels), dtype=jnp.float32)

    # Deterministic Conv2d(in_channels, num_labels, (1,1)) parameters.
    weight = jax.random.normal(k_w, (num_labels, in_channels), dtype=jnp.float32) * 0.02
    bias = jax.random.normal(k_b, (num_labels,), dtype=jnp.float32) * 0.01

    ref = _reference_forward(embeddings, weight, bias, tokenH, tokenW)

    # f32 path: matches reference tightly.
    out_f32 = linear_classifier_forward(
        embeddings, weight, bias, tokenH=tokenH, tokenW=tokenW)
    out_f32 = jax.block_until_ready(out_f32)
    assert out_f32.shape == (batch, num_labels, tokenH, tokenW), out_f32.shape
    assert jnp.allclose(out_f32, ref, atol=1e-5, rtol=1e-5), "f32 mismatch vs reference"

    # bf16 activations/weights (halves HBM read traffic), f32 accumulation.
    out_bf16 = linear_classifier_forward(
        embeddings, weight, bias, tokenH=tokenH, tokenW=tokenW,
        compute_dtype=jnp.bfloat16)
    out_bf16 = jax.block_until_ready(out_bf16)
    assert out_bf16.shape == (batch, num_labels, tokenH, tokenW), out_bf16.shape
    assert jnp.allclose(out_bf16, ref, atol=2e-2, rtol=2e-2), "bf16 mismatch vs reference"

    print("KERNEL_OK")
</pallas_src>

<mosaic_0001>
module attributes {stable_mosaic.version = 11 : i64} {
  func.func @_linear_classifier_kernel(%arg0: i32, %arg1: i32, %arg2: memref<1x256x32xf32, #tpu.memory_space<vmem>>, %arg3: memref<1x32xf32, #tpu.memory_space<vmem>>, %arg4: memref<1x1xf32, #tpu.memory_space<vmem>>, %arg5: memref<1x1x256xf32, #tpu.memory_space<vmem>>) attributes {dimension_semantics = [#tpu.dimension_semantics<parallel>, #tpu.dimension_semantics<parallel>], iteration_bounds = array<i64: 2, 1>, scalar_prefetch = 0 : i64, scratch_operands = 0 : i64, tpu.core_type = #tpu.core_type<tc>, window_params = [{transform_indices = @transform_0, window_bounds = array<i64: 1, 256, 32>}, {pipeline_mode = #tpu.pipeline_mode<synchronous>, transform_indices = @transform_1, window_bounds = array<i64: 1, 32>}, {pipeline_mode = #tpu.pipeline_mode<synchronous>, transform_indices = @transform_2, window_bounds = array<i64: 1, 1>}, {transform_indices = @transform_3, window_bounds = array<i64: 1, 1, 256>}]} {
    %c0 = arith.constant 0 : index
    %c0_0 = arith.constant 0 : index
    %0 = vector.load %arg3[%c0, %c0_0] : memref<1x32xf32, #tpu.memory_space<vmem>>, vector<1x32xf32>
    %c0_1 = arith.constant 0 : index
    %c0_2 = arith.constant 0 : index
    %c0_3 = arith.constant 0 : index
    %1 = vector.load %arg2[%c0_1, %c0_2, %c0_3] : memref<1x256x32xf32, #tpu.memory_space<vmem>>, vector<1x256x32xf32>
    %2 = vector.shape_cast %1 : vector<1x256x32xf32> to vector<256x32xf32>
    %cst = arith.constant dense<0.000000e+00> : vector<1x256xf32>
    %3 = tpu.matmul %0, %2, %cst {dimension_numbers = #tpu.dot_dimension_numbers<[1], [1], [0], [0], [0, 0, 1, 0], [], []>} : vector<1x32xf32>, vector<256x32xf32>, vector<1x256xf32> -> vector<1x256xf32>
    %c0_4 = arith.constant 0 : index
    %c0_5 = arith.constant 0 : index
    %4 = vector.load %arg4[%c0_4, %c0_5] : memref<1x1xf32, #tpu.memory_space<vmem>>, vector<1x1xf32>
    %5 = vector.broadcast %4 : vector<1x1xf32> to vector<1x256xf32>
    %6 = arith.addf %3, %5 : vector<1x256xf32>
    %c0_6 = arith.constant 0 : index
    %c0_7 = arith.constant 0 : index
    %c0_8 = arith.constant 0 : index
    %7 = vector.load %arg5[%c0_6, %c0_7, %c0_8] : memref<1x1x256xf32, #tpu.memory_space<vmem>>, vector<1x1x256xf32>
    %8 = vector.shape_cast %7 : vector<1x1x256xf32> to vector<1x256xf32>
    %9 = vector.shape_cast %6 : vector<1x256xf32> to vector<1x1x256xf32>
    tpu.vector_store %arg5[%c0_6, %c0_7, %c0_8], %9 {strides = array<i32>} : memref<1x1x256xf32, #tpu.memory_space<vmem>>, vector<1x1x256xf32>,
    return
  }
  func.func @transform_0(%arg0: i32, %arg1: i32) -> (i32, i32, i32) {
    %c0_i32 = arith.constant 0 : i32
    %c0_i32_0 = arith.constant 0 : i32
    return %arg0, %arg1, %c0_i32 : i32, i32, i32
  }
  func.func @transform_1(%arg0: i32, %arg1: i32) -> (i32, i32) {
    %c0_i32 = arith.constant 0 : i32
    %c0_i32_0 = arith.constant 0 : i32
    %c0_i32_1 = arith.constant 0 : i32
    return %c0_i32, %c0_i32_0 : i32, i32
  }
  func.func @transform_2(%arg0: i32, %arg1: i32) -> (i32, i32) {
    %c0_i32 = arith.constant 0 : i32
    %c0_i32_0 = arith.constant 0 : i32
    %c0_i32_1 = arith.constant 0 : i32
    return %c0_i32, %c0_i32_0 : i32, i32
  }
  func.func @transform_3(%arg0: i32, %arg1: i32) -> (i32, i32, i32) {
    %c0_i32 = arith.constant 0 : i32
    %c0_i32_0 = arith.constant 0 : i32
    return %arg0, %c0_i32, %arg1 : i32, i32, i32
  }
}

</mosaic_0001>

<llo_original>
// kernel: tpu_custom_call.1
$region0: #{tpu_custom_call.1}
  #allocation0 [shape = 'u32[]', space=smem, size = 0x4, offset = 0x4, fixed_abs, tag = 'smem constant byte address 0x4 - core index']
  #allocation1 [shape = 'u32[72,128]{1,0:T(1,128)}', space=vmem, size = 0x9000, scoped, tag = 'internal scratch']
  #allocation2 [shape = 'f32[1,1]{1,0:T(1,128)S(1)}', space=vmem, size = 0x200, scoped, tag = 'scoped memory for tpu_custom_call.1']
  %s0 = inlined_call_operand.vmem [shape: f32[2,256,32], index: 0, kind: input, shape index: {}]
  %s1 = inlined_call_operand.vmem [shape: f32[1,32], index: 1, kind: input, shape index: {}]
  %s2 = inlined_call_operand.<no memory space> [shape: f32[1,1], index: 2, kind: input, shape index: {}]
  %s3 = inlined_call_operand.hbm [shape: f32[2,1,256], index: 3, kind: output, shape index: {}]
  %s4 = sld [smem:[#allocation0]]
  $region45: #{tpu_custom_call.1} parent=0
    _
  %s6 = ssub.s32 1, %s4
  %s7 = scalar_select 0, %s6, %s4
  %v8 = vstv %s2
  %9 = vst [vmem:[#allocation2] sm:$0x1] %v8
  $region1: #{tpu_custom_call.1} parent=0
    #allocation3 [shape = 'u8[2048]{0}', space=vmem, size = 0x800, scoped, tag = 'output window, operand 0']
    #allocation4 [shape = 's32[2]{0}', space=sflag, size = 0x8, scoped, tag = 'scoped memory for tpu_custom_call.1']
    %10 = vsyncpa [#allocation4], 0
    %s11 = scalar_lea.sflag [#allocation4], 1
    %12 = vsyncpa %s11, 0
    loop: start=0, step=1, limit=4
    $region2: #{tpu_custom_call.1} parent=1 // loop_pre_header
      _
    $region3: #{tpu_custom_call.1} parent=1 // loop_header
      %s14 = sphi 0, %s18
      %p15 = scmp.ge.s32.totalorder %s14, 4
      %s21 = sphi 0, %s33
      %s22 = sphi 0, %s29
      %s23 = sphi 0, %s21
      %s24 = sphi 0, %s22
      %s25 = sphi 0, %s23
      %s26 = sphi 0, %s24
      %s38 = sphi 0, %s40
      %s41 = sphi 0, %s38
      %s42 = sphi 0, %s41
      %s58 = sphi 0, %s42
      %s62 = sphi 0, %s62
      %s64 = sphi 0, %s62
      %s65 = sphi 0, %s64
      %s79 = sphi 0, %s65
      %s83 = sphi 0, %s83
      %s85 = sphi 0, %s83
      %s86 = sphi 0, %s85
      %s100 = sphi 0, %s86
      %s108 = sphi 0, %s110
      %s111 = sphi 0, %s108
      %s112 = sphi 0, %s111
      %s128 = sphi 0, %s112
    $region4: #{tpu_custom_call.1} parent=1 // loop_header_branch
      %17 = sbr.rel (%p15) target = $region8
    $region5: #{tpu_custom_call.1} parent=1 // loop_body
      %s19 = ssub.s32 %s14, 1
      %s20 = ssub.s32 %s14, 2
      %s27 = sadd.s32 1, %s22
      %p28 = scmp.ge.s32.totalorder %s27, 1
      %s29 = scalar_select %p28, 0, %s27
      %s30 = sadd.s32 1, %s21
      %s31 = scalar_select %p28, %s30, %s21
      %p32 = scmp.ge.s32.totalorder %s31, 2
      %s33 = scalar_select %p32, 0, %s31
      %s34 = ssub.s32 %s21, %s33
      %s35 = ssub.s32 %s22, %s29
      %s36 = sor.u32 %s34, %s35
      %p37 = scmp.eq.s32.totalorder %s36, 0
      %s39 = sadd.s32 %s38, 1
      %s40 = scalar_select %p37, %s38, %s39
      %p43 = pneg %p37
      %p44 = scmp.eq.s32.totalorder %s14, 1
      %p45 = por %p43, %p44
      %p46 = scmp.ne.s32.totalorder %s38, %s41
      %p47 = scmp.eq.s32.totalorder %s14, 0
      %p48 = por %p46, %p47
      %p49 = scmp.ne.s32.totalorder %s38, %s41
      %p50 = scmp.eq.s32.totalorder %s19, 1
      %p51 = por %p49, %p50
      %p52 = scmp.ne.s32.totalorder %s41, %s42
      %p53 = scmp.eq.s32.totalorder %s19, 0
      %p54 = por %p52, %p53
      %p55 = scmp.ne.s32.totalorder %s41, %s42
      %p56 = scmp.eq.s32.totalorder %s20, 1
      %p57 = por %p55, %p56
      %p59 = scmp.ne.s32.totalorder %s42, %s58
      %p60 = scmp.eq.s32.totalorder %s20, 0
      %p61 = por %p59, %p60
      %s63 = sadd.s32 %s62, 1
      %p66 = scmp.eq.s32.totalorder %s14, 1
      %p67 = scmp.ne.s32.totalorder %s62, %s64
      %p68 = scmp.eq.s32.totalorder %s14, 0
      %p69 = por %p67, %p68
      %p70 = scmp.ne.s32.totalorder %s62, %s64
      %p71 = scmp.eq.s32.totalorder %s19, 1
      %p72 = por %p70, %p71
      %p73 = scmp.ne.s32.totalorder %s64, %s65
      %p74 = scmp.eq.s32.totalorder %s19, 0
      %p75 = por %p73, %p74
      %p76 = scmp.ne.s32.totalorder %s64, %s65
      %p77 = scmp.eq.s32.totalorder %s20, 1
      %p78 = por %p76, %p77
      %p80 = scmp.ne.s32.totalorder %s65, %s79
      %p81 = scmp.eq.s32.totalorder %s20, 0
      %p82 = por %p80, %p81
      %s84 = sadd.s32 %s83, 1
      %p87 = scmp.eq.s32.totalorder %s14, 1
      %p88 = scmp.ne.s32.totalorder %s83, %s85
      %p89 = scmp.eq.s32.totalorder %s14, 0
      %p90 = por %p88, %p89
      %p91 = scmp.ne.s32.totalorder %s83, %s85
      %p92 = scmp.eq.s32.totalorder %s19, 1
      %p93 = por %p91, %p92
      %p94 = scmp.ne.s32.totalorder %s85, %s86
      %p95 = scmp.eq.s32.totalorder %s19, 0
      %p96 = por %p94, %p95
      %p97 = scmp.ne.s32.totalorder %s85, %s86
      %p98 = scmp.eq.s32.totalorder %s20, 1
      %p99 = por %p97, %p98
      %p101 = scmp.ne.s32.totalorder %s86, %s100
      %p102 = scmp.eq.s32.totalorder %s20, 0
      %p103 = por %p101, %p102
      %s104 = ssub.s32 %s21, %s33
      %s105 = ssub.s32 %s22, %s29
      %s106 = sor.u32 %s104, %s105
      %p107 = scmp.eq.s32.totalorder %s106, 0
      %s109 = sadd.s32 %s108, 1
      %s110 = scalar_select %p107, %s108, %s109
      %p113 = pneg %p107
      %p114 = scmp.eq.s32.totalorder %s14, 1
      %p115 = por %p113, %p114
      %p116 = scmp.ne.s32.totalorder %s108, %s111
      %p117 = scmp.eq.s32.totalorder %s14, 0
      %p118 = por %p116, %p117
      %p119 = scmp.ne.s32.totalorder %s108, %s111
      %p120 = scmp.eq.s32.totalorder %s19, 1
      %p121 = por %p119, %p120
      %p122 = scmp.ne.s32.totalorder %s111, %s112
      %p123 = scmp.eq.s32.totalorder %s19, 0
      %p124 = por %p122, %p123
      %p125 = scmp.ne.s32.totalorder %s111, %s112
      %p126 = scmp.eq.s32.totalorder %s20, 1
      %p127 = por %p125, %p126
      %p129 = scmp.ne.s32.totalorder %s112, %s128
      %p130 = scmp.eq.s32.totalorder %s20, 0
      %p131 = por %p129, %p130
      %p132 = scmp.le.s32.totalorder 1, %s14
      %p133 = scmp.lt.s32.totalorder %s14, 3
      %p134 = pnand %p132, %p133
      %p135 = pneg %p134
      // Predicated region
      $region9: #{tpu_custom_call.1} parent=5 // pred_check
        _
      $region10: #{tpu_custom_call.1} parent=5 // pred_check_branch
        %137 = sbr.rel (%p134) target = $region12
      $region11: #{tpu_custom_call.1} parent=5 // pred_region
        %s138 = ssub.s32 %s14, 1
        // Predicated region
        $region13: #{tpu_custom_call.1} parent=11 // pred_check
          %p139 = pneg %p75
        $region14: #{tpu_custom_call.1} parent=11 // pred_check_branch
          %141 = sbr.rel (%p139) target = $region16
        $region15: #{tpu_custom_call.1} parent=11 // pred_region
          _
        $region16: #{tpu_custom_call.1} parent=11 // pred_fallthru
          _
        // Predicated region
        $region17: #{tpu_custom_call.1} parent=11 // pred_check
          %p142 = pneg %p96
        $region18: #{tpu_custom_call.1} parent=11 // pred_check_branch
          %144 = sbr.rel (%p142) target = $region20
        $region19: #{tpu_custom_call.1} parent=11 // pred_region
          _
        $region20: #{tpu_custom_call.1} parent=11 // pred_fallthru
          _
      $region12: #{tpu_custom_call.1} parent=5 // pred_fallthru
        _
      %p145 = scmp.lt.s32.totalorder %s14, 2
      // Predicated region
      $region21: #{tpu_custom_call.1} parent=5 // pred_check
        %p146 = pneg %p145
      $region22: #{tpu_custom_call.1} parent=5 // pred_check_branch
        %148 = sbr.rel (%p146) target = $region24
      $region23: #{tpu_custom_call.1} parent=5 // pred_region
        // Predicated region
        $region25: #{tpu_custom_call.1} parent=23 // pred_check
          %p149 = pneg %p48
        $region26: #{tpu_custom_call.1} parent=23 // pred_check_branch
          %151 = sbr.rel (%p149) target = $region28
        $region27: #{tpu_custom_call.1} parent=23 // pred_region
          %s152 = smul.u32 32, %s22
          %p153 = scmp.lt.s32.totalorder %s21, 1
          %s154 = scalar_select %p153, %s21, 1
          %p155 = scmp.lt.s32.totalorder %s152, 31
          %s156 = scalar_select %p155, %s152, 31
          %s157 = smul.addr %s154, 32
          %s158 = sadd.s32 %s156, %s157
          %s159 = smul.addr %s158, 8
          %s160 = scalar_lea.vmem %s0, %s159
          %s161 = smul.u32 32, %s22
        $region28: #{tpu_custom_call.1} parent=23 // pred_fallthru
          _
      $region24: #{tpu_custom_call.1} parent=5 // pred_fallthru
        _
      %p162 = scmp.le.s32.totalorder 1, %s14
      %p163 = scmp.lt.s32.totalorder %s14, 3
      %p164 = pnand %p162, %p163
      %p165 = pneg %p164
      // Predicated region
      $region29: #{tpu_custom_call.1} parent=5 // pred_check
        _
      $region30: #{tpu_custom_call.1} parent=5 // pred_check_branch
        %167 = sbr.rel (%p164) target = $region32
      $region31: #{tpu_custom_call.1} parent=5 // pred_region
        %s168 = ssub.s32 %s14, 1
        %s169 = smul.u32 32, %s24
        %p170 = scmp.lt.s32.totalorder %s23, 1
        %s171 = scalar_select %p170, %s23, 1
        %p172 = scmp.lt.s32.totalorder %s169, 31
        %s173 = scalar_select %p172, %s169, 31
        %s174 = smul.addr %s171, 32
        %s175 = sadd.s32 %s173, %s174
        %s176 = smul.addr %s175, 8
        %s177 = scalar_lea.vmem %s0, %s176
        %p178 = pneg %p54
        %p179 = pneg %p51
        %p180 = pneg %p75
        %p181 = pneg %p72
        %p182 = pneg %p96
        %p183 = pneg %p93
        %p184 = pneg %p124
        %p185 = pneg %p121
        %s186 = sand.u32 %s111, 1
        %s187 = scalar_lea.sflag [#allocation4], %s186
        %s188 = sand.u32 %s111, 1
        %s189 = smul.addr %s188, 2
        %s190 = scalar_lea.vmem [#allocation3], %s189
        %s191 = smul.u32 32, %s24
        %p192 = scmp.lt.s32.totalorder %s23, 1
        %s193 = scalar_select %p192, %s23, 1
        %p194 = scmp.lt.s32.totalorder %s191, 31
        %s195 = scalar_select %p194, %s191, 31
        %s196 = smul.addr %s193, 32
        %s197 = sadd.s32 %s195, %s196
        %s198 = smul.addr %s197, 8
        %s199 = scalar_lea.vmem %s0, %s198
        %s200 = smul.u32 32, %s24
        %s201 = smul.u32 2, %s24
        %v202 = vld [vmem:[%s1] sm:$0x1]
        %v203 = vld [vmem:[%s199] sm:$0xff]
        %v204 = vld [vmem:[%s199 + $0x8] sm:$0xff]
        %v205 = vld [vmem:[%s199 + $0x10] sm:$0xff]
        %v206 = vld [vmem:[%s199 + $0x18] sm:$0xff]
        %v207 = vld [vmem:[%s199 + $0x20] sm:$0xff]
        %v208 = vld [vmem:[%s199 + $0x28] sm:$0xff]
        %v209 = vld [vmem:[%s199 + $0x30] sm:$0xff]
        %v210 = vld [vmem:[%s199 + $0x38] sm:$0xff]
        %v211 = vld [vmem:[%s199 + $0x40] sm:$0xff]
        %v212 = vld [vmem:[%s199 + $0x48] sm:$0xff]
        %v213 = vld [vmem:[%s199 + $0x50] sm:$0xff]
        %v214 = vld [vmem:[%s199 + $0x58] sm:$0xff]
        %v215 = vld [vmem:[%s199 + $0x60] sm:$0xff]
        %v216 = vld [vmem:[%s199 + $0x68] sm:$0xff]
        %v217 = vld [vmem:[%s199 + $0x70] sm:$0xff]
        %v218 = vld [vmem:[%s199 + $0x78] sm:$0xff]
        %v219 = vld [vmem:[%s199 + $0x80] sm:$0xff]
        %v220 = vld [vmem:[%s199 + $0x88] sm:$0xff]
        %v221 = vld [vmem:[%s199 + $0x90] sm:$0xff]
        %v222 = vld [vmem:[%s199 + $0x98] sm:$0xff]
        %v223 = vld [vmem:[%s199 + $0xa0] sm:$0xff]
        %v224 = vld [vmem:[%s199 + $0xa8] sm:$0xff]
        %v225 = vld [vmem:[%s199 + $0xb0] sm:$0xff]
        %v226 = vld [vmem:[%s199 + $0xb8] sm:$0xff]
        %v227 = vld [vmem:[%s199 + $0xc0] sm:$0xff]
        %v228 = vld [vmem:[%s199 + $0xc8] sm:$0xff]
        %v229 = vld [vmem:[%s199 + $0xd0] sm:$0xff]
        %v230 = vld [vmem:[%s199 + $0xd8] sm:$0xff]
        %v231 = vld [vmem:[%s199 + $0xe0] sm:$0xff]
        %v232 = vld [vmem:[%s199 + $0xe8] sm:$0xff]
        %v233 = vld [vmem:[%s199 + $0xf0] sm:$0xff]
        %v234 = vld [vmem:[%s199 + $0xf8] sm:$0xff]
        %v235 = vld [vmem:[#allocation2] sm:$0x1]
        %237 = vset.pattern.permute.xlu0 0
        %238 = vperm.xlu0 %237, %v235
        %v239 = vpop.permute.xlu0 %238
        %v241 = vperm.slane %v239, 0
        %vm242 = vcmask 261120
        %v244 = vsel %vm242, %v202, 0
        %v247 = vsel %vm242, %v203, 0
        %v250 = vsel %vm242, %v204, 0
        %v253 = vsel %vm242, %v205, 0
        %v256 = vsel %vm242, %v206, 0
        %v259 = vsel %vm242, %v207, 0
        %v262 = vsel %vm242, %v208, 0
        %v265 = vsel %vm242, %v209, 0
        %v268 = vsel %vm242, %v210, 0
        %v271 = vsel %vm242, %v211, 0
        %v274 = vsel %vm242, %v212, 0
        %v277 = vsel %vm242, %v213, 0
        %v280 = vsel %vm242, %v214, 0
        %v283 = vsel %vm242, %v215, 0
        %v286 = vsel %vm242, %v216, 0
        %v289 = vsel %vm242, %v217, 0
        %v292 = vsel %vm242, %v218, 0
        %v295 = vsel %vm242, %v219, 0
        %v298 = vsel %vm242, %v220, 0
        %v301 = vsel %vm242, %v221, 0
        %v304 = vsel %vm242, %v222, 0
        %v307 = vsel %vm242, %v223, 0
        %v310 = vsel %vm242, %v224, 0
        %v313 = vsel %vm242, %v225, 0
        %v316 = vsel %vm242, %v226, 0
        %v319 = vsel %vm242, %v227, 0
        %v322 = vsel %vm242, %v228, 0
        %v325 = vsel %vm242, %v229, 0
        %v328 = vsel %vm242, %v230, 0
        %v331 = vsel %vm242, %v231, 0
        %v334 = vsel %vm242, %v232, 0
        %v337 = vsel %vm242, %v233, 0
        %v340 = vsel %vm242, %v234, 0
        %342 = vmatpush.xpose.msra.mxu0 %v292
        %343 = vmatpush.xpose.msra.mxu0 %v289
        %344 = vmatpush.xpose.msra.mxu0 %v286
        %345 = vmatpush.xpose.msra.mxu0 %v283
        %346 = vmatpush.xpose.msra.mxu0 %v280
        %347 = vmatpush.xpose.msra.mxu0 %v277
        %348 = vmatpush.xpose.msra.mxu0 %v274
        %349 = vmatpush.xpose.msra.mxu0 %v271
        %350 = vmatpush.xpose.msra.mxu0 %v268
        %351 = vmatpush.xpose.msra.mxu0 %v265
        %352 = vmatpush.xpose.msra.mxu0 %v262
        %353 = vmatpush.xpose.msra.mxu0 %v259
        %354 = vmatpush.xpose.msra.mxu0 %v256
        %355 = vmatpush.xpose.msra.mxu0 %v253
        %356 = vmatpush.xpose.msra.mxu0 %v250
        %357 = vmatpush.xpose.msra.mxu0 %v247
        %358 = vmatmul.f32.gmra.mxu0 %v244
        %v359 = vpop.f32.mrf.mxu0
        %v360 = vadd.f32 %v241, %v359
        %361 = vdwg.mxu0
        %362 = vmatpush.xpose.msra.mxu0 %v340
        %363 = vmatpush.xpose.msra.mxu0 %v337
        %364 = vmatpush.xpose.msra.mxu0 %v334
        %365 = vmatpush.xpose.msra.mxu0 %v331
        %366 = vmatpush.xpose.msra.mxu0 %v328
        %367 = vmatpush.xpose.msra.mxu0 %v325
        %368 = vmatpush.xpose.msra.mxu0 %v322
        %369 = vmatpush.xpose.msra.mxu0 %v319
        %370 = vmatpush.xpose.msra.mxu0 %v316
        %371 = vmatpush.xpose.msra.mxu0 %v313
        %372 = vmatpush.xpose.msra.mxu0 %v310
        %373 = vmatpush.xpose.msra.mxu0 %v307
        %374 = vmatpush.xpose.msra.mxu0 %v304
        %375 = vmatpush.xpose.msra.mxu0 %v301
        %376 = vmatpush.xpose.msra.mxu0 %v298
        %377 = vmatpush.xpose.msra.mxu0 %v295
        %378 = vmatmul.f32.gmra.mxu0 %v244
        %v379 = vpop.f32.mrf.mxu0
        %v380 = vadd.f32 %v241, %v379
        %381 = vdwg.mxu0
        %v384 = vrot.slane %v380, 7
        %vm385 = vcmask 1040384
        %v386 = vsel %vm385, %v360, %v384
        %v388 = vlaneseq
        %vm389 = vcmp.ge.s32.totalorder %v388, 0
        %vm390 = vcmp.lt.s32.totalorder %v388, 256
        %vm391 = vmand %vm389, %vm390
        %392 = vst.msk [vmem:[%s190] sm:$0x3] %vm391, %v386
        %s393 = sand.u32 %s111, 1
        %s394 = scalar_lea.sflag [#allocation4], %s393
        %s395 = sand.u32 %s111, 1
        %s396 = smul.addr %s395, 2
        %s397 = scalar_lea.vmem [#allocation3], %s396
        // Predicated region
        $region33: #{tpu_custom_call.1} parent=31 // pred_check
          %p398 = pneg %p121
        $region34: #{tpu_custom_call.1} parent=31 // pred_check_branch
          %400 = sbr.rel (%p398) target = $region36
        $region35: #{tpu_custom_call.1} parent=31 // pred_region
          %s401 = smul.u32 2, %s24
          %403 = vsyncadd %s394, 0
          %s404 = smul.addr %s23, 2
          %s405 = sadd.s32 %s401, %s404
          %s406 = scalar_lea.hbm %s3, %s405
          %s408 = sshll.u32 %s397, 4
          %s409 = int_to_ptr.vmem [resolvable:$true] %s408
          %s410 = sshll.u32 %s406, 4
          %s411 = int_to_ptr.hbm [resolvable:$true] %s410
          %413 = dma.vmem_to_hbm [thread:$0]  %s409, 32, %s411, %s394
        $region36: #{tpu_custom_call.1} parent=31 // pred_fallthru
          _
      $region32: #{tpu_custom_call.1} parent=5 // pred_fallthru
        _
      %p414 = scmp.le.s32.totalorder 2, %s14
      // Predicated region
      $region37: #{tpu_custom_call.1} parent=5 // pred_check
        %p415 = pneg %p414
      $region38: #{tpu_custom_call.1} parent=5 // pred_check_branch
        %417 = sbr.rel (%p415) target = $region40
      $region39: #{tpu_custom_call.1} parent=5 // pred_region
        %s418 = ssub.s32 %s14, 2
        // Predicated region
        $region41: #{tpu_custom_call.1} parent=39 // pred_check
          %p419 = pneg %p127
        $region42: #{tpu_custom_call.1} parent=39 // pred_check_branch
          %421 = sbr.rel (%p419) target = $region44
        $region43: #{tpu_custom_call.1} parent=39 // pred_region
          %s422 = sand.u32 %s112, 1
          %s423 = scalar_lea.sflag [#allocation4], %s422
          %s424 = sand.u32 %s112, 1
          %s425 = smul.addr %s424, 2
          %s426 = scalar_lea.vmem [#allocation3], %s425
          %428 = dma.done %s423, 32
        $region44: #{tpu_custom_call.1} parent=39 // pred_fallthru
          _
      $region40: #{tpu_custom_call.1} parent=5 // pred_fallthru
        _
    $region6: #{tpu_custom_call.1} parent=1 // loop_footer
      %s18 = sadd.s32 1, %s14
    $region7: #{tpu_custom_call.1} parent=1 // loop_footer_branch
      %13 = sbr.rel target = $region3
    $region8: #{tpu_custom_call.1} parent=1 // loop_exit
      _
    %429 = vsyncpa [#allocation4], 1
    %s430 = scalar_lea.sflag [#allocation4], 1
    %431 = vsyncpa %s430, 1

</llo_original>
